<compile_context>
chip_gen: v6e
topology: v6e:2x2x1
jax: 0.10.0
libtpu: 0.0.40
codegen_flags: <defaults>
</compile_context>

<pallas_src>
import functools

import jax
import jax.numpy as jnp
from jax.experimental import pallas as pl
from jax.experimental.pallas import tpu as pltpu

_SUB = 8
_LANE = 128


def _round_up(x: int, m: int) -> int:
    return ((x + m - 1) // m) * m


def _consensus_kernel(x_ref, w_ref, b_ref, o_ref, acc_ref, *, t_total, tt, mask_t):
    # x_ref: (tn, tt, C_in)   w_ref: (C_in, C_out) [already scaled by 1/T]
    # b_ref: (1, C_out)       o_ref: (tn, C_out)   acc_ref: (tn, C_in) f32 scratch
    t = pl.program_id(1)

    # ReLU in x's native dtype (bf16-friendly on v6e/v7x); accumulate the T-sum in f32.
    # TODO(synk): dropout is identity here (eval mode / p=0); training dropout would need
    # pltpu.prng_seed / prng_random_bits and does not commute with the T-reduction trick.
    xr = jnp.maximum(x_ref[...], 0)
    if mask_t:
        # Mask the T-tail: rows of the block beyond the true T must not enter the sum.
        t_idx = jax.lax.broadcasted_iota(jnp.int32, (1, tt, 1), 1)
        valid = (t * tt + t_idx) < t_total
        xr = jnp.where(valid, xr, 0)
    partial = jnp.sum(xr.astype(jnp.float32), axis=1)  # (tn, C_in) f32

    @pl.when(t == 0)
    def _init():
        acc_ref[...] = partial  # direct store: no zero-fill + read-modify-write

    @pl.when(t > 0)
    def _accum():
        acc_ref[...] += partial

    @pl.when(t == pl.num_programs(1) - 1)
    def _finalize():
        xm = acc_ref[...]
        if w_ref.dtype != jnp.float32:
            xm = xm.astype(w_ref.dtype)  # bf16 x bf16 -> f32 MXU fast path
        o = jnp.dot(xm, w_ref[...], preferred_element_type=jnp.float32)
        o = o + b_ref[...].astype(jnp.float32)
        o_ref[...] = o.astype(o_ref.dtype)


def classifier_consensus(x, w, b):
    """x: (N, T, C_in); w: (C_in, C_out); b: (1, C_out) -> (N, C_out)."""
    N, T, C_in = x.shape
    C_out = w.shape[1]
    out_dtype = x.dtype

    # Fold the 1/T of the time-mean into the (tiny) weight: (sum_T relu(x)) @ (w/T) + b.
    # w stays in its incoming dtype (no f32 upcast).
    w_scaled = (w.astype(jnp.float32) * (1.0 / T)).astype(w.dtype)

    dsize = jnp.dtype(x.dtype).itemsize
    wsize = jnp.dtype(w.dtype).itemsize
    bsize = jnp.dtype(b.dtype).itemsize
    osize = jnp.dtype(out_dtype).itemsize

    # --- VMEM capacity / budget (v7x: 64 MiB per TC; v5e/v6e: 128 MiB) ---
    try:
        vmem_cap = int(pltpu.get_tpu_info().vmem_capacity_bytes)
    except Exception:
        vmem_cap = 64 * 1024 * 1024  # conservative (v7x) fallback
    vmem_cap = max(vmem_cap, 32 * 1024 * 1024)
    # Budget for the double-buffered x stream (the only big, per-step resident).
    x_budget = min(vmem_cap // 3, 40 * 1024 * 1024)

    # --- N tile: multiple of 8 (or full extent when N tiny); >=2 grid steps when N > 8
    #     so both v7x TensorCores get work. ---
    if N <= _SUB:
        tn = N
    else:
        tn = min(128, _round_up((N + 1) // 2, _SUB))

    # --- T tile: as big as the x budget allows (shrink tt first, then tn). ---
    c_in_vmem = _round_up(C_in, _LANE)

    def _tt_cap(tn_):
        per_row = 2 * tn_ * c_in_vmem * dsize  # bytes per unit of tt, double-buffered
        return (x_budget // per_row) // _SUB * _SUB

    tt_cap = _tt_cap(tn)
    while tt_cap < _SUB and tn > _SUB:
        tn = max(_SUB, _round_up(tn // 2, _SUB))
        tt_cap = _tt_cap(tn)
    tt_cap = max(tt_cap, _SUB)

    if T <= tt_cap:
        tt = T  # full extent: single T step, no tail mask needed
    else:
        tt = tt_cap  # multiple of 8; tail chunk masked in-kernel
    mask_t = (T % tt) != 0

    grid = (pl.cdiv(N, tn), pl.cdiv(T, tt))

    # --- Tight VMEM estimate (padded VMEM shapes; acc/out are per-N-tile residents). ---
    c_out_vmem = _round_up(C_out, _LANE)
    tn_vmem = _round_up(tn, _SUB)
    tt_vmem = _round_up(tt, _SUB)
    vmem_need = (
        2 * tn_vmem * tt_vmem * c_in_vmem * dsize   # x double buffer
        + 2 * c_in_vmem * c_out_vmem * wsize        # w (constant index map, 2 bufs)
        + 2 * _SUB * c_out_vmem * bsize             # b (padded to 8 sublanes)
        + 2 * tn_vmem * c_out_vmem * osize          # out
        + tn_vmem * c_in_vmem * 4                   # f32 accumulator scratch
    )
    vmem_limit = int(
        min(max(vmem_need + (4 << 20), 32 << 20), vmem_cap - (4 << 20))
    )

    cost = pl.CostEstimate(
        flops=2 * N * T * C_in + 2 * N * C_in * C_out,
        transcendentals=0,
        bytes_accessed=(N * T * C_in * dsize
                        + C_in * C_out * wsize
                        + C_out * bsize
                        + N * C_out * osize),
    )

    kernel = functools.partial(_consensus_kernel, t_total=T, tt=tt, mask_t=mask_t)

    out = pl.pallas_call(
        kernel,
        out_shape=jax.ShapeDtypeStruct((N, C_out), out_dtype),
        grid_spec=pltpu.PrefetchScalarGridSpec(
            num_scalar_prefetch=0,
            grid=grid,
            in_specs=[
                # Full-extent C_in block (exempt from 128-divisibility); no wrapper-side pad.
                pl.BlockSpec((tn, tt, C_in), lambda i, t: (i, t, 0)),
                pl.BlockSpec((C_in, C_out), lambda i, t: (0, 0)),
                pl.BlockSpec((1, C_out), lambda i, t: (0, 0)),
            ],
            out_specs=pl.BlockSpec((tn, C_out), lambda i, t: (i, 0)),
            scratch_shapes=[pltpu.VMEM((tn, C_in), jnp.float32)],
        ),
        compiler_params=pltpu.CompilerParams(
            dimension_semantics=("parallel", "arbitrary"),
            vmem_limit_bytes=vmem_limit,
        ),
        cost_estimate=cost,
    )(x, w_scaled, b)

    return out


def _reference(x, w, b):
    x = jnp.maximum(x, 0.0)
    y = jnp.einsum("ntc,co->nto", x, w) + b[0]
    return jnp.mean(y, axis=1)


if __name__ == "__main__":
    key = jax.random.PRNGKey(0)
    kx, kw, kb = jax.random.split(key, 3)

    N, T, C_in, C_out = 2, 8, 32, 16  # small shapes: batch=2, seq=8, hidden=32, classes=16

    x = jax.random.normal(kx, (N, T, C_in), dtype=jnp.float32)
    # Deterministic Linear params (Kaiming-uniform-like bound, exact values irrelevant)
    bound = 1.0 / (C_in ** 0.5)
    w = jax.random.uniform(kw, (C_in, C_out), minval=-bound, maxval=bound, dtype=jnp.float32)
    b = jax.random.uniform(kb, (1, C_out), minval=-bound, maxval=bound, dtype=jnp.float32)

    out = classifier_consensus(x, w, b)
    out = jax.block_until_ready(out)

    ref = _reference(x, w, b)
    assert out.shape == (N, C_out)
    assert jnp.allclose(out, ref, atol=1e-5, rtol=1e-5), "mismatch vs reference"

    print("KERNEL_OK")
</pallas_src>

<mosaic_0001>
module attributes {stable_mosaic.version = 11 : i64} {
  func.func @_consensus_kernel(%arg0: i32, %arg1: i32, %arg2: memref<2x8x32xf32, #tpu.memory_space<vmem>>, %arg3: memref<32x16xf32, #tpu.memory_space<vmem>>, %arg4: memref<1x16xf32, #tpu.memory_space<vmem>>, %arg5: memref<2x16xf32, #tpu.memory_space<vmem>>, %arg6: memref<2x32xf32, #tpu.memory_space<vmem>>) attributes {dimension_semantics = [#tpu.dimension_semantics<parallel>, #tpu.dimension_semantics<arbitrary>], iteration_bounds = array<i64: 1, 1>, scalar_prefetch = 0 : i64, scratch_operands = 1 : i64, tpu.core_type = #tpu.core_type<tc>, window_params = [{transform_indices = @transform_0, window_bounds = array<i64: 2, 8, 32>}, {pipeline_mode = #tpu.pipeline_mode<synchronous>, transform_indices = @transform_1, window_bounds = array<i64: 32, 16>}, {pipeline_mode = #tpu.pipeline_mode<synchronous>, transform_indices = @transform_2, window_bounds = array<i64: 1, 16>}, {transform_indices = @transform_3, window_bounds = array<i64: 2, 16>}]} {
    %c0 = arith.constant 0 : index
    %c0_0 = arith.constant 0 : index
    %c0_1 = arith.constant 0 : index
    %0 = vector.load %arg2[%c0, %c0_0, %c0_1] : memref<2x8x32xf32, #tpu.memory_space<vmem>>, vector<2x8x32xf32>
    %cst = arith.constant 0.000000e+00 : f32
    %1 = vector.broadcast %cst : f32 to vector<2x8x32xf32>
    %2 = arith.maximumf %0, %1 : vector<2x8x32xf32>
    %cst_2 = arith.constant dense<0.000000e+00> : vector<2x32xf32>
    %3 = vector.multi_reduction <add>, %2, %cst_2 [1] : vector<2x8x32xf32> to vector<2x32xf32>
    %c0_i32 = arith.constant 0 : i32
    %4 = arith.cmpi eq, %arg1, %c0_i32 : i32
    %5 = arith.extui %4 : i1 to i32
    %c0_i32_3 = arith.constant 0 : i32
    %6 = arith.cmpi ne, %5, %c0_i32_3 : i32
    scf.if %6 {
      %c0_8 = arith.constant 0 : index
      %c0_9 = arith.constant 0 : index
      %13 = vector.load %arg6[%c0_8, %c0_9] : memref<2x32xf32, #tpu.memory_space<vmem>>, vector<2x32xf32>
      tpu.vector_store %arg6[%c0_8, %c0_9], %3 {strides = array<i32>} : memref<2x32xf32, #tpu.memory_space<vmem>>, vector<2x32xf32>,
    } else {
    }
    %c0_i32_4 = arith.constant 0 : i32
    %7 = arith.cmpi sgt, %arg1, %c0_i32_4 : i32
    %8 = arith.extui %7 : i1 to i32
    %c0_i32_5 = arith.constant 0 : i32
    %9 = arith.cmpi ne, %8, %c0_i32_5 : i32
    scf.if %9 {
      %c0_8 = arith.constant 0 : index
      %c0_9 = arith.constant 0 : index
      %13 = vector.load %arg6[%c0_8, %c0_9] : memref<2x32xf32, #tpu.memory_space<vmem>>, vector<2x32xf32>
      %14 = arith.addf %13, %3 : vector<2x32xf32>
      %c0_10 = arith.constant 0 : index
      %c0_11 = arith.constant 0 : index
      %15 = vector.load %arg6[%c0_10, %c0_11] : memref<2x32xf32, #tpu.memory_space<vmem>>, vector<2x32xf32>
      tpu.vector_store %arg6[%c0_10, %c0_11], %14 {strides = array<i32>} : memref<2x32xf32, #tpu.memory_space<vmem>>, vector<2x32xf32>,
    } else {
    }
    %c0_i32_6 = arith.constant 0 : i32
    %10 = arith.cmpi eq, %arg1, %c0_i32_6 : i32
    %11 = arith.extui %10 : i1 to i32
    %c0_i32_7 = arith.constant 0 : i32
    %12 = arith.cmpi ne, %11, %c0_i32_7 : i32
    scf.if %12 {
      %c0_8 = arith.constant 0 : index
      %c0_9 = arith.constant 0 : index
      %13 = vector.load %arg6[%c0_8, %c0_9] : memref<2x32xf32, #tpu.memory_space<vmem>>, vector<2x32xf32>
      %c0_10 = arith.constant 0 : index
      %c0_11 = arith.constant 0 : index
      %14 = vector.load %arg3[%c0_10, %c0_11] : memref<32x16xf32, #tpu.memory_space<vmem>>, vector<32x16xf32>
      %cst_12 = arith.constant dense<0.000000e+00> : vector<2x16xf32>
      %15 = tpu.matmul %13, %14, %cst_12 {dimension_numbers = #tpu.dot_dimension_numbers<[1], [0], [0], [1], [0, 0, 1, 1], [], []>} : vector<2x32xf32>, vector<32x16xf32>, vector<2x16xf32> -> vector<2x16xf32>
      %c0_13 = arith.constant 0 : index
      %c0_14 = arith.constant 0 : index
      %16 = vector.load %arg4[%c0_13, %c0_14] : memref<1x16xf32, #tpu.memory_space<vmem>>, vector<1x16xf32>
      %17 = vector.broadcast %16 : vector<1x16xf32> to vector<2x16xf32>
      %18 = arith.addf %15, %17 : vector<2x16xf32>
      %c0_15 = arith.constant 0 : index
      %c0_16 = arith.constant 0 : index
      %19 = vector.load %arg5[%c0_15, %c0_16] : memref<2x16xf32, #tpu.memory_space<vmem>>, vector<2x16xf32>
      tpu.vector_store %arg5[%c0_15, %c0_16], %18 {strides = array<i32>} : memref<2x16xf32, #tpu.memory_space<vmem>>, vector<2x16xf32>,
    } else {
    }
    return
  }
  func.func @transform_0(%arg0: i32, %arg1: i32) -> (i32, i32, i32) {
    %c0_i32 = arith.constant 0 : i32
    %c0_i32_0 = arith.constant 0 : i32
    return %arg0, %arg1, %c0_i32 : i32, i32, i32
  }
  func.func @transform_1(%arg0: i32, %arg1: i32) -> (i32, i32) {
    %c0_i32 = arith.constant 0 : i32
    %c0_i32_0 = arith.constant 0 : i32
    %c0_i32_1 = arith.constant 0 : i32
    return %c0_i32, %c0_i32_0 : i32, i32
  }
  func.func @transform_2(%arg0: i32, %arg1: i32) -> (i32, i32) {
    %c0_i32 = arith.constant 0 : i32
    %c0_i32_0 = arith.constant 0 : i32
    %c0_i32_1 = arith.constant 0 : i32
    return %c0_i32, %c0_i32_0 : i32, i32
  }
  func.func @transform_3(%arg0: i32, %arg1: i32) -> (i32, i32) {
    %c0_i32 = arith.constant 0 : i32
    %c0_i32_0 = arith.constant 0 : i32
    return %arg0, %c0_i32 : i32, i32
  }
}

</mosaic_0001>

<llo_original>
// kernel: tpu_custom_call.1
$region0: #{tpu_custom_call.1}
  #allocation0 [shape = 'u32[]', space=smem, size = 0x4, offset = 0x4, fixed_abs, tag = 'smem constant byte address 0x4 - core index']
  #allocation1 [shape = 'u32[144,128]{1,0:T(1,128)}', space=vmem, size = 0x12000, scoped, tag = 'internal scratch']
  #allocation2 [shape = 'f32[2,32]{1,0:T(2,128)}', space=vmem, size = 0x400, scoped, tag = 'scratch operand']
  %s0 = inlined_call_operand.vmem [shape: f32[2,8,32], index: 0, kind: input, shape index: {}]
  %s1 = inlined_call_operand.vmem [shape: f32[32,16], index: 1, kind: input, shape index: {}]
  %s2 = inlined_call_operand.vmem [shape: f32[1,16], index: 2, kind: input, shape index: {}]
  %s3 = inlined_call_operand.hbm [shape: f32[2,16], index: 3, kind: output, shape index: {}]
  %s4 = sld [smem:[#allocation0]]
  $region34: #{tpu_custom_call.1} parent=0
    _
  %s6 = ssub.s32 1, %s4
  %s7 = scalar_select 0, %s6, %s4
  $region1: #{tpu_custom_call.1} parent=0
    #allocation3 [shape = 'u8[1024]{0}', space=vmem, size = 0x400, scoped, tag = 'output window, operand 0, single buffered']
    #allocation4 [shape = 's32[1]{0}', space=sflag, size = 0x4, scoped, tag = 'scoped memory for tpu_custom_call.1']
    %8 = vsyncpa [#allocation4], 0
    // Predicated region
    $region2: #{tpu_custom_call.1} parent=1 // pred_check
      _
    $region3: #{tpu_custom_call.1} parent=1 // pred_check_branch
      %10 = sbr.rel (0) target = $region5
    $region4: #{tpu_custom_call.1} parent=1 // pred_region
      _
    $region5: #{tpu_custom_call.1} parent=1 // pred_fallthru
      _
    // Predicated region
    $region6: #{tpu_custom_call.1} parent=1 // pred_check
      _
    $region7: #{tpu_custom_call.1} parent=1 // pred_check_branch
      %12 = sbr.rel (0) target = $region9
    $region8: #{tpu_custom_call.1} parent=1 // pred_region
      _
    $region9: #{tpu_custom_call.1} parent=1 // pred_fallthru
      _
    // Predicated region
    $region10: #{tpu_custom_call.1} parent=1 // pred_check
      _
    $region11: #{tpu_custom_call.1} parent=1 // pred_check_branch
      %14 = sbr.rel (0) target = $region13
    $region12: #{tpu_custom_call.1} parent=1 // pred_region
      _
    $region13: #{tpu_custom_call.1} parent=1 // pred_fallthru
      _
    %v15 = vld [vmem:[%s0] sm:$0xff]
    %v16 = vld [vmem:[%s0 + $0x8] sm:$0xff]
    %v17 = vmax.f32 %v15, 0.0
    %v18 = vmax.f32 %v16, 0.0
    %vm19 = vcmask 261120
    %v20 = vsel %vm19, %v17, 0.0
    %v21 = vrot.slane %v20, 4
    %v22 = vadd.f32 %v20, %v21
    %v23 = vrot.slane %v22, 2
    %v24 = vadd.f32 %v22, %v23
    %v25 = vrot.slane %v24, 1
    %v26 = vadd.f32 %v24, %v25
    %v27 = vsel %vm19, %v18, 0.0
    %v28 = vrot.slane %v27, 4
    %v29 = vadd.f32 %v27, %v28
    %v30 = vrot.slane %v29, 2
    %v31 = vadd.f32 %v29, %v30
    %v32 = vrot.slane %v31, 1
    %v33 = vadd.f32 %v31, %v32
    %p34 = scmp.eq.s32.totalorder 0, 0
    // Predicated region
    $region14: #{tpu_custom_call.1} parent=1 // pred_check
      %p35 = pneg %p34
    $region15: #{tpu_custom_call.1} parent=1 // pred_check_branch
      %37 = sbr.rel (%p35) target = $region17
    $region16: #{tpu_custom_call.1} parent=1 // pred_region
      %vm40 = vcmask 1041409
      %v41 = vsel %vm40, %v33, %v26
      %vm43 = vcmask 254976
      %44 = vst.msk [vmem:[#allocation2] sm:$0x3] %vm43, %v41
    $region17: #{tpu_custom_call.1} parent=1 // pred_fallthru
      _
    %p45 = scmp.gt.s32.totalorder 0, 0
    // Predicated region
    $region18: #{tpu_custom_call.1} parent=1 // pred_check
      %p46 = pneg %p45
    $region19: #{tpu_custom_call.1} parent=1 // pred_check_branch
      %48 = sbr.rel (%p46) target = $region21
    $region20: #{tpu_custom_call.1} parent=1 // pred_region
      %v49 = vld [vmem:[#allocation2] sm:$0x3]
      %vm52 = vcmask 1041409
      %v53 = vsel %vm52, %v33, %v26
      %v55 = vadd.f32 %v49, %v53
      %vm56 = vcmask 254976
      %57 = vst.msk [vmem:[#allocation2] sm:$0x3] %vm56, %v55
    $region21: #{tpu_custom_call.1} parent=1 // pred_fallthru
      _
    // Predicated region
    $region22: #{tpu_custom_call.1} parent=1 // pred_check
      %p58 = pneg %p34
    $region23: #{tpu_custom_call.1} parent=1 // pred_check_branch
      %60 = sbr.rel (%p58) target = $region25
    $region24: #{tpu_custom_call.1} parent=1 // pred_region
      %v61 = vld [vmem:[#allocation2] sm:$0x3]
      %v62 = vld [vmem:[%s1] sm:$0xff]
      %v63 = vld [vmem:[%s1 + $0x8] sm:$0xff]
      %v64 = vld [vmem:[%s1 + $0x10] sm:$0xff]
      %v65 = vld [vmem:[%s1 + $0x18] sm:$0xff]
      %v66 = vld [vmem:[%s2] sm:$0x1]
      %v68 = vlaneseq
      %v69 = vshrl.u32 %v68, 7
      %v70 = vsub.s32 0, %v69
      %v71 = vrot.slane %v66, %v70
      %v74 = vsel %vm19, %v61, 0
      %76 = vmatprep.subr.mxu0 0.0
      %77 = vmatpush1.msra.mxu0 0.0
      %78 = vmatprep.subr.mxu0 0.0
      %79 = vmatpush1.msra.mxu0 0.0
      %80 = vmatprep.subr.mxu0 0.0
      %81 = vmatpush1.msra.mxu0 0.0
      %82 = vmatprep.subr.mxu0 0.0
      %83 = vmatpush1.msra.mxu0 0.0
      %84 = vmatprep.subr.mxu0 0.0
      %85 = vmatpush1.msra.mxu0 0.0
      %86 = vmatprep.subr.mxu0 0.0
      %87 = vmatpush1.msra.mxu0 0.0
      %88 = vmatprep.subr.mxu0 0.0
      %89 = vmatpush1.msra.mxu0 0.0
      %90 = vmatprep.subr.mxu0 0.0
      %91 = vmatpush1.msra.mxu0 0.0
      %92 = vmatprep.subr.mxu0 0.0
      %93 = vmatpush1.msra.mxu0 0.0
      %94 = vmatprep.subr.mxu0 0.0
      %95 = vmatpush1.msra.mxu0 0.0
      %96 = vmatprep.subr.mxu0 0.0
      %97 = vmatpush1.msra.mxu0 0.0
      %98 = vmatprep.subr.mxu0 0.0
      %99 = vmatpush1.msra.mxu0 0.0
      %100 = vmatprep.subr.mxu0 0.0
      %101 = vmatpush1.msra.mxu0 %v65
      %102 = vmatprep.subr.mxu0 0.0
      %103 = vmatpush1.msra.mxu0 %v64
      %104 = vmatprep.subr.mxu0 0.0
      %105 = vmatpush1.msra.mxu0 %v63
      %106 = vmatprep.subr.mxu0 0.0
      %107 = vmatpush1.msra.mxu0 %v62
      %108 = vmatprep.subr.mxu0 0.0
      %109 = vmatpush2.msra.mxu0 0.0
      %110 = vmatprep.subr.mxu0 0.0
      %111 = vmatpush2.msra.mxu0 0.0
      %112 = vmatprep.subr.mxu0 0.0
      %113 = vmatpush2.msra.mxu0 0.0
      %114 = vmatprep.subr.mxu0 0.0
      %115 = vmatpush2.msra.mxu0 0.0
      %116 = vmatprep.subr.mxu0 0.0
      %117 = vmatpush2.msra.mxu0 0.0
      %118 = vmatprep.subr.mxu0 0.0
      %119 = vmatpush2.msra.mxu0 0.0
      %120 = vmatprep.subr.mxu0 0.0
      %121 = vmatpush2.msra.mxu0 0.0
      %122 = vmatprep.subr.mxu0 0.0
      %123 = vmatpush2.msra.mxu0 0.0
      %124 = vmatprep.subr.mxu0 0.0
      %125 = vmatpush2.msra.mxu0 0.0
      %126 = vmatprep.subr.mxu0 0.0
      %127 = vmatpush2.msra.mxu0 0.0
      %128 = vmatprep.subr.mxu0 0.0
      %129 = vmatpush2.msra.mxu0 0.0
      %130 = vmatprep.subr.mxu0 0.0
      %131 = vmatpush2.msra.mxu0 0.0
      %132 = vmatprep.subr.mxu0 0.0
      %133 = vmatpush2.msra.mxu0 0.0
      %134 = vmatprep.subr.mxu0 0.0
      %135 = vmatpush2.msra.mxu0 0.0
      %136 = vmatprep.subr.mxu0 0.0
      %137 = vmatpush2.msra.mxu0 0.0
      %138 = vmatprep.subr.mxu0 0.0
      %139 = vmatpush2.msra.mxu0 0.0
      %140 = vmatprep.mubr.f32.mxu0 0.0
      %141 = vmatmul.mubr.f32.gmra.mxu0 %v74
      %v142 = vpop.f32.mrf.mxu0
      %v143 = vadd.f32 %v71, %v142
      %v144 = vpop.f32.mrf.mxu0
      %145 = vdwg.mxu0
      %vm146 = vcmask 123904
      %147 = vst.msk [vmem:[#allocation3] sm:$0x3] %vm146, %v143
    $region25: #{tpu_custom_call.1} parent=1 // pred_fallthru
      _
    // Predicated region
    $region26: #{tpu_custom_call.1} parent=1 // pred_check
      _
    $region27: #{tpu_custom_call.1} parent=1 // pred_check_branch
      %149 = sbr.rel (0) target = $region29
    $region28: #{tpu_custom_call.1} parent=1 // pred_region
      %s151 = ssub.s32 32, 32
      %152 = vsyncadd [#allocation4], %s151
      %s154 = sshll.u32 [#allocation3], 4
      %s155 = int_to_ptr.vmem [resolvable:$true] %s154
      %157 = dma.vmem_to_hbm [thread:$0]  %s155, 32, %s3, [#allocation4]
    $region29: #{tpu_custom_call.1} parent=1 // pred_fallthru
      _
    // Predicated region
    $region30: #{tpu_custom_call.1} parent=1 // pred_check
      _
    $region31: #{tpu_custom_call.1} parent=1 // pred_check_branch
      %159 = sbr.rel (0) target = $region33
    $region32: #{tpu_custom_call.1} parent=1 // pred_region
      %160 = dma.done [#allocation4], 32
    $region33: #{tpu_custom_call.1} parent=1 // pred_fallthru
      _
    %161 = vsyncpa [#allocation4], 1

</llo_original>
